<compile_context>
chip_gen: v6e
topology: v6e:2x2x1
jax: 0.10.0
libtpu: 0.0.40
codegen_flags: <defaults>
</compile_context>

<pallas_src>
import math

import jax
import jax.numpy as jnp
from jax.experimental import pallas as pl
from jax.experimental.pallas import tpu as pltpu


_NUM_PARAMS = 10
_MAX_DEG = 3.0
_LUMA_R, _LUMA_G, _LUMA_B = 0.299, 0.587, 0.114


def _shift_ranges(H, W):
    """Static integer source-offset bands for rotation by at most _MAX_DEG degrees."""
    cy = (H - 1) / 2.0
    cx = (W - 1) / 2.0
    rad = math.radians(_MAX_DEG)
    dy_max = math.sin(rad) * cx + (1.0 - math.cos(rad)) * cy   # max |sy - i|
    dx_max = math.sin(rad) * cy + (1.0 - math.cos(rad)) * cx   # max |sx - j|
    eps = 1e-4
    drs = list(range(math.floor(-dy_max - eps), math.floor(dy_max + eps) + 2))
    dcs = list(range(math.floor(-dx_max - eps), math.floor(dx_max + eps) + 2))
    return drs, dcs


def _make_augment_kernel(NB, C, H, W):
    L = H * W
    cy = (H - 1) / 2.0
    cx = (W - 1) / 2.0
    f32 = jnp.float32
    DRS, DCS = _shift_ranges(H, W)
    w_pow2 = (W & (W - 1)) == 0

    def kernel(params_ref, x_ref, o_ref):
        P = params_ref[...]                               # (NB, 1, NUM_PARAMS) f32

        def p(k):                                         # per-image scalar -> (NB,1,1)
            return P[:, :, k:k + 1]

        jit_m  = p(0)    # 1.0 when ColorJitter applied, else 0.0
        b_fac  = p(1)    # brightness factor in [0.9, 1.1]
        c_fac  = p(2)    # contrast factor in [0.9, 1.1]
        gray_m = p(3)
        rot_m  = p(4)
        cos_t  = p(5)
        sin_t  = p(6)
        blur_m = p(7)
        g_edge = p(8)    # normalized 1D gaussian edge tap
        g_mid  = p(9)    # normalized 1D gaussian center tap

        img = x_ref[...]                                  # (NB, C, L) f32, lane-dense

        # Flat spatial index maps shared by all images/channels: (1, 1, L) int32.
        k_idx = jax.lax.broadcasted_iota(jnp.int32, (1, 1, L), 2)
        if w_pow2:
            j_idx = k_idx & (W - 1)
            i_idx = k_idx >> (W.bit_length() - 1)
        else:
            # TODO(synk): non-power-of-2 W uses int vector div/rem; power-of-2 path is
            # the one exercised here.
            j_idx = k_idx % W
            i_idx = k_idx // W
        fi = i_idx.astype(f32)
        fj = j_idx.astype(f32)

        def luma(im):                                     # (NB,C,L) -> (NB,1,L)
            return (_LUMA_R * im[:, 0:1, :] + _LUMA_G * im[:, 1:2, :]
                    + _LUMA_B * im[:, 2:3, :])

        # ---- 1) ColorJitter(brightness, contrast), per-image blend ----
        bright = jnp.clip(img * b_fac, 0.0, 1.0)
        mean_g = jnp.sum(luma(bright), axis=2, keepdims=True) * (1.0 / L)   # (NB,1,1)
        jit = jnp.clip(bright * c_fac + (1.0 - c_fac) * mean_g, 0.0, 1.0)
        img = img + jit_m * (jit - img)

        # ---- 2) RandomGrayscale ----
        g = luma(img)
        img = img + gray_m * (g - img)                    # broadcasts g over channels

        # ---- 3) RandomRotation (bilinear, zeros padding, about image center) ----
        # Inverse map output pixel -> source coords; per-image (NB,1,L) maps.
        sx = cos_t * (fj - cx) + sin_t * (fi - cy) + cx
        sy = cos_t * (fi - cy) - sin_t * (fj - cx) + cy
        x0f = jnp.floor(sx)
        y0f = jnp.floor(sy)
        wx = sx - x0f
        wy = sy - y0f
        x0 = x0f.astype(jnp.int32)
        y0 = y0f.astype(jnp.int32)

        def col_weight(dc):
            jt = j_idx + dc
            hit0 = x0 == jt
            hit1 = x0 + 1 == jt
            if dc > 0:
                valid = jt < W
                hit0 = hit0 & valid
                hit1 = hit1 & valid
            elif dc < 0:
                valid = jt >= 0
                hit0 = hit0 & valid
                hit1 = hit1 & valid
            return hit0.astype(f32) * (1.0 - wx) + hit1.astype(f32) * wx

        def row_weight(dr):
            it = i_idx + dr
            hit0 = y0 == it
            hit1 = y0 + 1 == it
            if dr > 0:
                valid = it < H
                hit0 = hit0 & valid
                hit1 = hit1 & valid
            elif dr < 0:
                valid = it >= 0
                hit0 = hit0 & valid
                hit1 = hit1 & valid
            return hit0.astype(f32) * (1.0 - wy) + hit1.astype(f32) * wy

        # Column weight maps hoisted out of the row loop (reused for every dr).
        wx_maps = [col_weight(dc) for dc in DCS]

        acc = None
        for dr in DRS:
            wy_dr = row_weight(dr)
            inner = None
            for kc, dc in enumerate(DCS):
                d = dr * W + dc                           # combined flat lane offset
                src = img if d == 0 else pltpu.roll(img, (-d) % L, axis=2)
                term = wx_maps[kc] * src
                inner = term if inner is None else inner + term
            t = wy_dr * inner
            acc = t if acc is None else acc + t
        img = img + rot_m * (acc - img)

        # ---- 4) RandomGaussianBlur (3x3 separable, reflect padding) ----
        jm0 = j_idx == 0
        jmW = j_idx == W - 1
        im0 = i_idx == 0
        imH = i_idx == H - 1

        left = pltpu.roll(img, 1, axis=2)                 # gathers column j-1
        right = pltpu.roll(img, (L - 1) % L, axis=2)      # gathers column j+1
        nb_h = jnp.where(jm0, right, left) + jnp.where(jmW, left, right)
        h = g_mid * img + g_edge * nb_h

        up = pltpu.roll(h, W % L, axis=2)                 # gathers row i-1
        down = pltpu.roll(h, (L - W) % L, axis=2)         # gathers row i+1
        nb_v = jnp.where(im0, down, up) + jnp.where(imH, up, down)
        blur = g_mid * h + g_edge * nb_v
        img = img + blur_m * (blur - img)

        o_ref[...] = img

    return kernel


def calligraphy_augment(x, params, *, block_images=8):
    """x: (B, 3, H, W) f32 in [0,1]; params: (B, 10) f32 per-sample augmentation params."""
    B, C, H, W = x.shape
    if C != 3:
        raise ValueError("CalligraphyAugmentations expects RGB (C=3) input")
    L = H * W
    # Largest divisor of B that is <= block_images (images processed per grid step).
    NB = max(d for d in range(1, min(B, block_images) + 1) if B % d == 0)

    x2 = x.reshape(B, C, L).astype(jnp.float32)                 # lane-dense (C, H*W) per image
    p3 = params.astype(jnp.float32).reshape(B, 1, _NUM_PARAMS)  # tiny per-image param block

    kernel = _make_augment_kernel(NB, C, H, W)
    out = pl.pallas_call(
        kernel,
        out_shape=jax.ShapeDtypeStruct((B, C, L), jnp.float32),
        grid=(B // NB,),
        in_specs=[
            pl.BlockSpec((NB, 1, _NUM_PARAMS), lambda g: (g, 0, 0)),
            pl.BlockSpec((NB, C, L), lambda g: (g, 0, 0)),
        ],
        out_specs=pl.BlockSpec((NB, C, L), lambda g: (g, 0, 0)),
        input_output_aliases={1: 0},                            # reuse the image HBM buffer
        compiler_params=pltpu.CompilerParams(
            dimension_semantics=("parallel",),                  # images independent (v7x 2 TCs)
        ),
    )(p3, x2)
    return out.reshape(B, C, H, W)


def make_params(key, B):
    """Deterministically sample per-sample augmentation parameters (host glue)."""
    keys = jax.random.split(key, 8)
    jit_on  = (jax.random.uniform(keys[0], (B,)) < 0.5).astype(jnp.float32)
    b_fac   = jax.random.uniform(keys[1], (B,), minval=0.9, maxval=1.1)
    c_fac   = jax.random.uniform(keys[2], (B,), minval=0.9, maxval=1.1)
    gray_on = (jax.random.uniform(keys[3], (B,)) < 0.2).astype(jnp.float32)
    rot_on  = (jax.random.uniform(keys[4], (B,)) < 0.5).astype(jnp.float32)
    deg     = jax.random.uniform(keys[5], (B,), minval=-_MAX_DEG, maxval=_MAX_DEG)
    theta   = deg * (math.pi / 180.0)
    blur_on = (jax.random.uniform(keys[6], (B,)) < 0.5).astype(jnp.float32)
    sigma   = jax.random.uniform(keys[7], (B,), minval=0.1, maxval=1.0)
    e = jnp.exp(-0.5 / (sigma * sigma))          # un-normalized edge tap of 3-tap gaussian
    denom = 1.0 + 2.0 * e
    g_edge = e / denom
    g_mid = 1.0 / denom
    params = jnp.stack(
        [jit_on, b_fac, c_fac, gray_on, rot_on,
         jnp.cos(theta), jnp.sin(theta),
         blur_on, g_edge, g_mid],
        axis=1,
    ).astype(jnp.float32)
    return params


if __name__ == "__main__":
    key = jax.random.PRNGKey(0)
    k_img, k_aug = jax.random.split(key)
    B, C, H, W = 2, 3, 16, 16
    x = jax.random.uniform(k_img, (B, C, H, W), dtype=jnp.float32)  # images in [0,1]
    params = make_params(k_aug, B)

    y = calligraphy_augment(x, params)
    y = jax.block_until_ready(y)

    assert y.shape == (B, C, H, W) and y.dtype == jnp.float32
    assert bool(jnp.all(jnp.isfinite(y)))
    print("KERNEL_OK")
</pallas_src>

<mosaic_0001>
module attributes {stable_mosaic.version = 11 : i64} {
  func.func @kernel(%arg0: i32, %arg1: memref<2x1x10xf32, #tpu.memory_space<vmem>>, %arg2: memref<2x3x256xf32, #tpu.memory_space<vmem>>, %arg3: memref<2x3x256xf32, #tpu.memory_space<vmem>>) attributes {dimension_semantics = [#tpu.dimension_semantics<parallel>], iteration_bounds = array<i64: 1>, scalar_prefetch = 0 : i64, scratch_operands = 0 : i64, tpu.core_type = #tpu.core_type<tc>, window_params = [{transform_indices = @transform_0, window_bounds = array<i64: 2, 1, 10>}, {transform_indices = @transform_1, window_bounds = array<i64: 2, 3, 256>}, {transform_indices = @transform_2, window_bounds = array<i64: 2, 3, 256>}]} {
    %c0 = arith.constant 0 : index
    %c0_0 = arith.constant 0 : index
    %c0_1 = arith.constant 0 : index
    %0 = vector.load %arg1[%c0, %c0_0, %c0_1] : memref<2x1x10xf32, #tpu.memory_space<vmem>>, vector<2x1x10xf32>
    %1 = vector.extract_strided_slice %0 {offsets = [0, 0, 0], sizes = [2, 1, 1], strides = [1, 1, 1]} : vector<2x1x10xf32> to vector<2x1x1xf32>
    %2 = vector.extract_strided_slice %0 {offsets = [0, 0, 1], sizes = [2, 1, 1], strides = [1, 1, 1]} : vector<2x1x10xf32> to vector<2x1x1xf32>
    %3 = vector.extract_strided_slice %0 {offsets = [0, 0, 2], sizes = [2, 1, 1], strides = [1, 1, 1]} : vector<2x1x10xf32> to vector<2x1x1xf32>
    %4 = vector.extract_strided_slice %0 {offsets = [0, 0, 3], sizes = [2, 1, 1], strides = [1, 1, 1]} : vector<2x1x10xf32> to vector<2x1x1xf32>
    %5 = vector.extract_strided_slice %0 {offsets = [0, 0, 4], sizes = [2, 1, 1], strides = [1, 1, 1]} : vector<2x1x10xf32> to vector<2x1x1xf32>
    %6 = vector.extract_strided_slice %0 {offsets = [0, 0, 5], sizes = [2, 1, 1], strides = [1, 1, 1]} : vector<2x1x10xf32> to vector<2x1x1xf32>
    %7 = vector.extract_strided_slice %0 {offsets = [0, 0, 6], sizes = [2, 1, 1], strides = [1, 1, 1]} : vector<2x1x10xf32> to vector<2x1x1xf32>
    %8 = vector.extract_strided_slice %0 {offsets = [0, 0, 7], sizes = [2, 1, 1], strides = [1, 1, 1]} : vector<2x1x10xf32> to vector<2x1x1xf32>
    %9 = vector.extract_strided_slice %0 {offsets = [0, 0, 8], sizes = [2, 1, 1], strides = [1, 1, 1]} : vector<2x1x10xf32> to vector<2x1x1xf32>
    %10 = vector.extract_strided_slice %0 {offsets = [0, 0, 9], sizes = [2, 1, 1], strides = [1, 1, 1]} : vector<2x1x10xf32> to vector<2x1x1xf32>
    %c0_2 = arith.constant 0 : index
    %c0_3 = arith.constant 0 : index
    %c0_4 = arith.constant 0 : index
    %11 = vector.load %arg2[%c0_2, %c0_3, %c0_4] : memref<2x3x256xf32, #tpu.memory_space<vmem>>, vector<2x3x256xf32>
    %12 = tpu.iota {dimensions = array<i32: 2>} : vector<1x1x256xi32>
    %c15_i32 = arith.constant 15 : i32
    %13 = vector.broadcast %c15_i32 : i32 to vector<1x1x256xi32>
    %14 = arith.andi %12, %13 : vector<1x1x256xi32>
    %c4_i32 = arith.constant 4 : i32
    %15 = vector.broadcast %c4_i32 : i32 to vector<1x1x256xi32>
    %16 = arith.shrsi %12, %15 : vector<1x1x256xi32>
    %17 = arith.sitofp %16 : vector<1x1x256xi32> to vector<1x1x256xf32>
    %18 = arith.sitofp %14 : vector<1x1x256xi32> to vector<1x1x256xf32>
    %19 = vector.broadcast %2 : vector<2x1x1xf32> to vector<2x3x256xf32>
    %20 = arith.mulf %11, %19 : vector<2x3x256xf32>
    %cst = arith.constant 0.000000e+00 : f32
    %cst_5 = arith.constant 1.000000e+00 : f32
    %21 = vector.broadcast %cst : f32 to vector<2x3x256xf32>
    %22 = arith.maximumf %21, %20 : vector<2x3x256xf32>
    %23 = vector.broadcast %cst_5 : f32 to vector<2x3x256xf32>
    %24 = arith.minimumf %23, %22 : vector<2x3x256xf32>
    %25 = vector.extract_strided_slice %24 {offsets = [0, 0, 0], sizes = [2, 1, 256], strides = [1, 1, 1]} : vector<2x3x256xf32> to vector<2x1x256xf32>
    %cst_6 = arith.constant 2.990000e-01 : f32
    %26 = vector.broadcast %cst_6 : f32 to vector<2x1x256xf32>
    %27 = arith.mulf %26, %25 : vector<2x1x256xf32>
    %28 = vector.extract_strided_slice %24 {offsets = [0, 1, 0], sizes = [2, 1, 256], strides = [1, 1, 1]} : vector<2x3x256xf32> to vector<2x1x256xf32>
    %cst_7 = arith.constant 5.870000e-01 : f32
    %29 = vector.broadcast %cst_7 : f32 to vector<2x1x256xf32>
    %30 = arith.mulf %29, %28 : vector<2x1x256xf32>
    %31 = arith.addf %27, %30 : vector<2x1x256xf32>
    %32 = vector.extract_strided_slice %24 {offsets = [0, 2, 0], sizes = [2, 1, 256], strides = [1, 1, 1]} : vector<2x3x256xf32> to vector<2x1x256xf32>
    %cst_8 = arith.constant 1.140000e-01 : f32
    %33 = vector.broadcast %cst_8 : f32 to vector<2x1x256xf32>
    %34 = arith.mulf %33, %32 : vector<2x1x256xf32>
    %35 = arith.addf %31, %34 : vector<2x1x256xf32>
    %cst_9 = arith.constant dense<0.000000e+00> : vector<2x1xf32>
    %36 = vector.multi_reduction <add>, %35, %cst_9 [2] : vector<2x1x256xf32> to vector<2x1xf32>
    %37 = vector.shape_cast %36 : vector<2x1xf32> to vector<2x1x1xf32>
    %cst_10 = arith.constant 3.906250e-03 : f32
    %38 = vector.broadcast %cst_10 : f32 to vector<2x1x1xf32>
    %39 = arith.mulf %37, %38 : vector<2x1x1xf32>
    %40 = vector.broadcast %3 : vector<2x1x1xf32> to vector<2x3x256xf32>
    %41 = arith.mulf %24, %40 : vector<2x3x256xf32>
    %cst_11 = arith.constant 1.000000e+00 : f32
    %42 = vector.broadcast %cst_11 : f32 to vector<2x1x1xf32>
    %43 = arith.subf %42, %3 : vector<2x1x1xf32>
    %44 = arith.mulf %43, %39 : vector<2x1x1xf32>
    %45 = vector.broadcast %44 : vector<2x1x1xf32> to vector<2x3x256xf32>
    %46 = arith.addf %41, %45 : vector<2x3x256xf32>
    %cst_12 = arith.constant 0.000000e+00 : f32
    %cst_13 = arith.constant 1.000000e+00 : f32
    %47 = vector.broadcast %cst_12 : f32 to vector<2x3x256xf32>
    %48 = arith.maximumf %47, %46 : vector<2x3x256xf32>
    %49 = vector.broadcast %cst_13 : f32 to vector<2x3x256xf32>
    %50 = arith.minimumf %49, %48 : vector<2x3x256xf32>
    %51 = arith.subf %50, %11 : vector<2x3x256xf32>
    %52 = vector.broadcast %1 : vector<2x1x1xf32> to vector<2x3x256xf32>
    %53 = arith.mulf %52, %51 : vector<2x3x256xf32>
    %54 = arith.addf %11, %53 : vector<2x3x256xf32>
    %55 = vector.extract_strided_slice %54 {offsets = [0, 0, 0], sizes = [2, 1, 256], strides = [1, 1, 1]} : vector<2x3x256xf32> to vector<2x1x256xf32>
    %cst_14 = arith.constant 2.990000e-01 : f32
    %56 = vector.broadcast %cst_14 : f32 to vector<2x1x256xf32>
    %57 = arith.mulf %56, %55 : vector<2x1x256xf32>
    %58 = vector.extract_strided_slice %54 {offsets = [0, 1, 0], sizes = [2, 1, 256], strides = [1, 1, 1]} : vector<2x3x256xf32> to vector<2x1x256xf32>
    %cst_15 = arith.constant 5.870000e-01 : f32
    %59 = vector.broadcast %cst_15 : f32 to vector<2x1x256xf32>
    %60 = arith.mulf %59, %58 : vector<2x1x256xf32>
    %61 = arith.addf %57, %60 : vector<2x1x256xf32>
    %62 = vector.extract_strided_slice %54 {offsets = [0, 2, 0], sizes = [2, 1, 256], strides = [1, 1, 1]} : vector<2x3x256xf32> to vector<2x1x256xf32>
    %cst_16 = arith.constant 1.140000e-01 : f32
    %63 = vector.broadcast %cst_16 : f32 to vector<2x1x256xf32>
    %64 = arith.mulf %63, %62 : vector<2x1x256xf32>
    %65 = arith.addf %61, %64 : vector<2x1x256xf32>
    %66 = vector.broadcast %65 : vector<2x1x256xf32> to vector<2x3x256xf32>
    %67 = arith.subf %66, %54 : vector<2x3x256xf32>
    %68 = vector.broadcast %4 : vector<2x1x1xf32> to vector<2x3x256xf32>
    %69 = arith.mulf %68, %67 : vector<2x3x256xf32>
    %70 = arith.addf %54, %69 : vector<2x3x256xf32>
    %cst_17 = arith.constant 7.500000e+00 : f32
    %71 = vector.broadcast %cst_17 : f32 to vector<1x1x256xf32>
    %72 = arith.subf %18, %71 : vector<1x1x256xf32>
    %73 = vector.broadcast %6 : vector<2x1x1xf32> to vector<2x1x256xf32>
    %74 = vector.broadcast %72 : vector<1x1x256xf32> to vector<2x1x256xf32>
    %75 = arith.mulf %73, %74 : vector<2x1x256xf32>
    %cst_18 = arith.constant 7.500000e+00 : f32
    %76 = vector.broadcast %cst_18 : f32 to vector<1x1x256xf32>
    %77 = arith.subf %17, %76 : vector<1x1x256xf32>
    %78 = vector.broadcast %7 : vector<2x1x1xf32> to vector<2x1x256xf32>
    %79 = vector.broadcast %77 : vector<1x1x256xf32> to vector<2x1x256xf32>
    %80 = arith.mulf %78, %79 : vector<2x1x256xf32>
    %81 = arith.addf %75, %80 : vector<2x1x256xf32>
    %cst_19 = arith.constant 7.500000e+00 : f32
    %82 = vector.broadcast %cst_19 : f32 to vector<2x1x256xf32>
    %83 = arith.addf %81, %82 : vector<2x1x256xf32>
    %cst_20 = arith.constant 7.500000e+00 : f32
    %84 = vector.broadcast %cst_20 : f32 to vector<1x1x256xf32>
    %85 = arith.subf %17, %84 : vector<1x1x256xf32>
    %86 = vector.broadcast %6 : vector<2x1x1xf32> to vector<2x1x256xf32>
    %87 = vector.broadcast %85 : vector<1x1x256xf32> to vector<2x1x256xf32>
    %88 = arith.mulf %86, %87 : vector<2x1x256xf32>
    %cst_21 = arith.constant 7.500000e+00 : f32
    %89 = vector.broadcast %cst_21 : f32 to vector<1x1x256xf32>
    %90 = arith.subf %18, %89 : vector<1x1x256xf32>
    %91 = vector.broadcast %7 : vector<2x1x1xf32> to vector<2x1x256xf32>
    %92 = vector.broadcast %90 : vector<1x1x256xf32> to vector<2x1x256xf32>
    %93 = arith.mulf %91, %92 : vector<2x1x256xf32>
    %94 = arith.subf %88, %93 : vector<2x1x256xf32>
    %cst_22 = arith.constant 7.500000e+00 : f32
    %95 = vector.broadcast %cst_22 : f32 to vector<2x1x256xf32>
    %96 = arith.addf %94, %95 : vector<2x1x256xf32>
    %97 = math.floor %83 : vector<2x1x256xf32>
    %98 = math.floor %96 : vector<2x1x256xf32>
    %99 = arith.subf %83, %97 : vector<2x1x256xf32>
    %100 = arith.subf %96, %98 : vector<2x1x256xf32>
    %101 = arith.fptosi %97 : vector<2x1x256xf32> to vector<2x1x256xi32>
    %102 = arith.fptosi %98 : vector<2x1x256xf32> to vector<2x1x256xi32>
    %c-1_i32 = arith.constant -1 : i32
    %103 = vector.broadcast %c-1_i32 : i32 to vector<1x1x256xi32>
    %104 = arith.addi %14, %103 : vector<1x1x256xi32>
    %105 = vector.broadcast %104 : vector<1x1x256xi32> to vector<2x1x256xi32>
    %106 = arith.cmpi eq, %101, %105 : vector<2x1x256xi32>
    %c1_i32 = arith.constant 1 : i32
    %107 = vector.broadcast %c1_i32 : i32 to vector<2x1x256xi32>
    %108 = arith.addi %101, %107 : vector<2x1x256xi32>
    %109 = vector.broadcast %104 : vector<1x1x256xi32> to vector<2x1x256xi32>
    %110 = arith.cmpi eq, %108, %109 : vector<2x1x256xi32>
    %c0_i32 = arith.constant 0 : i32
    %111 = vector.broadcast %c0_i32 : i32 to vector<1x1x256xi32>
    %112 = arith.cmpi sge, %104, %111 : vector<1x1x256xi32>
    %113 = vector.broadcast %112 : vector<1x1x256xi1> to vector<2x1x256xi1>
    %114 = arith.andi %106, %113 : vector<2x1x256xi1>
    %115 = vector.broadcast %112 : vector<1x1x256xi1> to vector<2x1x256xi1>
    %116 = arith.andi %110, %115 : vector<2x1x256xi1>
    %117 = arith.extui %114 : vector<2x1x256xi1> to vector<2x1x256xi32>
    %118 = arith.sitofp %117 : vector<2x1x256xi32> to vector<2x1x256xf32>
    %cst_23 = arith.constant 1.000000e+00 : f32
    %119 = vector.broadcast %cst_23 : f32 to vector<2x1x256xf32>
    %120 = arith.subf %119, %99 : vector<2x1x256xf32>
    %121 = arith.mulf %118, %120 : vector<2x1x256xf32>
    %122 = arith.extui %116 : vector<2x1x256xi1> to vector<2x1x256xi32>
    %123 = arith.sitofp %122 : vector<2x1x256xi32> to vector<2x1x256xf32>
    %124 = arith.mulf %123, %99 : vector<2x1x256xf32>
    %125 = arith.addf %121, %124 : vector<2x1x256xf32>
    %c0_i32_24 = arith.constant 0 : i32
    %126 = vector.broadcast %c0_i32_24 : i32 to vector<1x1x256xi32>
    %127 = arith.addi %14, %126 : vector<1x1x256xi32>
    %128 = vector.broadcast %127 : vector<1x1x256xi32> to vector<2x1x256xi32>
    %129 = arith.cmpi eq, %101, %128 : vector<2x1x256xi32>
    %c1_i32_25 = arith.constant 1 : i32
    %130 = vector.broadcast %c1_i32_25 : i32 to vector<2x1x256xi32>
    %131 = arith.addi %101, %130 : vector<2x1x256xi32>
    %132 = vector.broadcast %127 : vector<1x1x256xi32> to vector<2x1x256xi32>
    %133 = arith.cmpi eq, %131, %132 : vector<2x1x256xi32>
    %134 = arith.extui %129 : vector<2x1x256xi1> to vector<2x1x256xi32>
    %135 = arith.sitofp %134 : vector<2x1x256xi32> to vector<2x1x256xf32>
    %cst_26 = arith.constant 1.000000e+00 : f32
    %136 = vector.broadcast %cst_26 : f32 to vector<2x1x256xf32>
    %137 = arith.subf %136, %99 : vector<2x1x256xf32>
    %138 = arith.mulf %135, %137 : vector<2x1x256xf32>
    %139 = arith.extui %133 : vector<2x1x256xi1> to vector<2x1x256xi32>
    %140 = arith.sitofp %139 : vector<2x1x256xi32> to vector<2x1x256xf32>
    %141 = arith.mulf %140, %99 : vector<2x1x256xf32>
    %142 = arith.addf %138, %141 : vector<2x1x256xf32>
    %c1_i32_27 = arith.constant 1 : i32
    %143 = vector.broadcast %c1_i32_27 : i32 to vector<1x1x256xi32>
    %144 = arith.addi %14, %143 : vector<1x1x256xi32>
    %145 = vector.broadcast %144 : vector<1x1x256xi32> to vector<2x1x256xi32>
    %146 = arith.cmpi eq, %101, %145 : vector<2x1x256xi32>
    %c1_i32_28 = arith.constant 1 : i32
    %147 = vector.broadcast %c1_i32_28 : i32 to vector<2x1x256xi32>
    %148 = arith.addi %101, %147 : vector<2x1x256xi32>
    %149 = vector.broadcast %144 : vector<1x1x256xi32> to vector<2x1x256xi32>
    %150 = arith.cmpi eq, %148, %149 : vector<2x1x256xi32>
    %c16_i32 = arith.constant 16 : i32
    %151 = vector.broadcast %c16_i32 : i32 to vector<1x1x256xi32>
    %152 = arith.cmpi slt, %144, %151 : vector<1x1x256xi32>
    %153 = vector.broadcast %152 : vector<1x1x256xi1> to vector<2x1x256xi1>
    %154 = arith.andi %146, %153 : vector<2x1x256xi1>
    %155 = vector.broadcast %152 : vector<1x1x256xi1> to vector<2x1x256xi1>
    %156 = arith.andi %150, %155 : vector<2x1x256xi1>
    %157 = arith.extui %154 : vector<2x1x256xi1> to vector<2x1x256xi32>
    %158 = arith.sitofp %157 : vector<2x1x256xi32> to vector<2x1x256xf32>
    %cst_29 = arith.constant 1.000000e+00 : f32
    %159 = vector.broadcast %cst_29 : f32 to vector<2x1x256xf32>
    %160 = arith.subf %159, %99 : vector<2x1x256xf32>
    %161 = arith.mulf %158, %160 : vector<2x1x256xf32>
    %162 = arith.extui %156 : vector<2x1x256xi1> to vector<2x1x256xi32>
    %163 = arith.sitofp %162 : vector<2x1x256xi32> to vector<2x1x256xf32>
    %164 = arith.mulf %163, %99 : vector<2x1x256xf32>
    %165 = arith.addf %161, %164 : vector<2x1x256xf32>
    %c-1_i32_30 = arith.constant -1 : i32
    %166 = vector.broadcast %c-1_i32_30 : i32 to vector<1x1x256xi32>
    %167 = arith.addi %16, %166 : vector<1x1x256xi32>
    %168 = vector.broadcast %167 : vector<1x1x256xi32> to vector<2x1x256xi32>
    %169 = arith.cmpi eq, %102, %168 : vector<2x1x256xi32>
    %c1_i32_31 = arith.constant 1 : i32
    %170 = vector.broadcast %c1_i32_31 : i32 to vector<2x1x256xi32>
    %171 = arith.addi %102, %170 : vector<2x1x256xi32>
    %172 = vector.broadcast %167 : vector<1x1x256xi32> to vector<2x1x256xi32>
    %173 = arith.cmpi eq, %171, %172 : vector<2x1x256xi32>
    %c0_i32_32 = arith.constant 0 : i32
    %174 = vector.broadcast %c0_i32_32 : i32 to vector<1x1x256xi32>
    %175 = arith.cmpi sge, %167, %174 : vector<1x1x256xi32>
    %176 = vector.broadcast %175 : vector<1x1x256xi1> to vector<2x1x256xi1>
    %177 = arith.andi %169, %176 : vector<2x1x256xi1>
    %178 = vector.broadcast %175 : vector<1x1x256xi1> to vector<2x1x256xi1>
    %179 = arith.andi %173, %178 : vector<2x1x256xi1>
    %180 = arith.extui %177 : vector<2x1x256xi1> to vector<2x1x256xi32>
    %181 = arith.sitofp %180 : vector<2x1x256xi32> to vector<2x1x256xf32>
    %cst_33 = arith.constant 1.000000e+00 : f32
    %182 = vector.broadcast %cst_33 : f32 to vector<2x1x256xf32>
    %183 = arith.subf %182, %100 : vector<2x1x256xf32>
    %184 = arith.mulf %181, %183 : vector<2x1x256xf32>
    %185 = arith.extui %179 : vector<2x1x256xi1> to vector<2x1x256xi32>
    %186 = arith.sitofp %185 : vector<2x1x256xi32> to vector<2x1x256xf32>
    %187 = arith.mulf %186, %100 : vector<2x1x256xf32>
    %188 = arith.addf %184, %187 : vector<2x1x256xf32>
    %c17_i32 = arith.constant 17 : i32
    %189 = tpu.dynamic_rotate %70 by %c17_i32 dim 2 : vector<2x3x256xf32>, i32 -> vector<2x3x256xf32>
    %190 = vector.broadcast %125 : vector<2x1x256xf32> to vector<2x3x256xf32>
    %191 = arith.mulf %190, %189 : vector<2x3x256xf32>
    %c16_i32_34 = arith.constant 16 : i32
    %192 = tpu.dynamic_rotate %70 by %c16_i32_34 dim 2 : vector<2x3x256xf32>, i32 -> vector<2x3x256xf32>
    %193 = vector.broadcast %142 : vector<2x1x256xf32> to vector<2x3x256xf32>
    %194 = arith.mulf %193, %192 : vector<2x3x256xf32>
    %195 = arith.addf %191, %194 : vector<2x3x256xf32>
    %c15_i32_35 = arith.constant 15 : i32
    %196 = tpu.dynamic_rotate %70 by %c15_i32_35 dim 2 : vector<2x3x256xf32>, i32 -> vector<2x3x256xf32>
    %197 = vector.broadcast %165 : vector<2x1x256xf32> to vector<2x3x256xf32>
    %198 = arith.mulf %197, %196 : vector<2x3x256xf32>
    %199 = arith.addf %195, %198 : vector<2x3x256xf32>
    %200 = vector.broadcast %188 : vector<2x1x256xf32> to vector<2x3x256xf32>
    %201 = arith.mulf %200, %199 : vector<2x3x256xf32>
    %c0_i32_36 = arith.constant 0 : i32
    %202 = vector.broadcast %c0_i32_36 : i32 to vector<1x1x256xi32>
    %203 = arith.addi %16, %202 : vector<1x1x256xi32>
    %204 = vector.broadcast %203 : vector<1x1x256xi32> to vector<2x1x256xi32>
    %205 = arith.cmpi eq, %102, %204 : vector<2x1x256xi32>
    %c1_i32_37 = arith.constant 1 : i32
    %206 = vector.broadcast %c1_i32_37 : i32 to vector<2x1x256xi32>
    %207 = arith.addi %102, %206 : vector<2x1x256xi32>
    %208 = vector.broadcast %203 : vector<1x1x256xi32> to vector<2x1x256xi32>
    %209 = arith.cmpi eq, %207, %208 : vector<2x1x256xi32>
    %210 = arith.extui %205 : vector<2x1x256xi1> to vector<2x1x256xi32>
    %211 = arith.sitofp %210 : vector<2x1x256xi32> to vector<2x1x256xf32>
    %cst_38 = arith.constant 1.000000e+00 : f32
    %212 = vector.broadcast %cst_38 : f32 to vector<2x1x256xf32>
    %213 = arith.subf %212, %100 : vector<2x1x256xf32>
    %214 = arith.mulf %211, %213 : vector<2x1x256xf32>
    %215 = arith.extui %209 : vector<2x1x256xi1> to vector<2x1x256xi32>
    %216 = arith.sitofp %215 : vector<2x1x256xi32> to vector<2x1x256xf32>
    %217 = arith.mulf %216, %100 : vector<2x1x256xf32>
    %218 = arith.addf %214, %217 : vector<2x1x256xf32>
    %c1_i32_39 = arith.constant 1 : i32
    %219 = tpu.dynamic_rotate %70 by %c1_i32_39 dim 2 : vector<2x3x256xf32>, i32 -> vector<2x3x256xf32>
    %220 = vector.broadcast %125 : vector<2x1x256xf32> to vector<2x3x256xf32>
    %221 = arith.mulf %220, %219 : vector<2x3x256xf32>
    %222 = vector.broadcast %142 : vector<2x1x256xf32> to vector<2x3x256xf32>
    %223 = arith.mulf %222, %70 : vector<2x3x256xf32>
    %224 = arith.addf %221, %223 : vector<2x3x256xf32>
    %c255_i32 = arith.constant 255 : i32
    %225 = tpu.dynamic_rotate %70 by %c255_i32 dim 2 : vector<2x3x256xf32>, i32 -> vector<2x3x256xf32>
    %226 = vector.broadcast %165 : vector<2x1x256xf32> to vector<2x3x256xf32>
    %227 = arith.mulf %226, %225 : vector<2x3x256xf32>
    %228 = arith.addf %224, %227 : vector<2x3x256xf32>
    %229 = vector.broadcast %218 : vector<2x1x256xf32> to vector<2x3x256xf32>
    %230 = arith.mulf %229, %228 : vector<2x3x256xf32>
    %231 = arith.addf %201, %230 : vector<2x3x256xf32>
    %c1_i32_40 = arith.constant 1 : i32
    %232 = vector.broadcast %c1_i32_40 : i32 to vector<1x1x256xi32>
    %233 = arith.addi %16, %232 : vector<1x1x256xi32>
    %234 = vector.broadcast %233 : vector<1x1x256xi32> to vector<2x1x256xi32>
    %235 = arith.cmpi eq, %102, %234 : vector<2x1x256xi32>
    %c1_i32_41 = arith.constant 1 : i32
    %236 = vector.broadcast %c1_i32_41 : i32 to vector<2x1x256xi32>
    %237 = arith.addi %102, %236 : vector<2x1x256xi32>
    %238 = vector.broadcast %233 : vector<1x1x256xi32> to vector<2x1x256xi32>
    %239 = arith.cmpi eq, %237, %238 : vector<2x1x256xi32>
    %c16_i32_42 = arith.constant 16 : i32
    %240 = vector.broadcast %c16_i32_42 : i32 to vector<1x1x256xi32>
    %241 = arith.cmpi slt, %233, %240 : vector<1x1x256xi32>
    %242 = vector.broadcast %241 : vector<1x1x256xi1> to vector<2x1x256xi1>
    %243 = arith.andi %235, %242 : vector<2x1x256xi1>
    %244 = vector.broadcast %241 : vector<1x1x256xi1> to vector<2x1x256xi1>
    %245 = arith.andi %239, %244 : vector<2x1x256xi1>
    %246 = arith.extui %243 : vector<2x1x256xi1> to vector<2x1x256xi32>
    %247 = arith.sitofp %246 : vector<2x1x256xi32> to vector<2x1x256xf32>
    %cst_43 = arith.constant 1.000000e+00 : f32
    %248 = vector.broadcast %cst_43 : f32 to vector<2x1x256xf32>
    %249 = arith.subf %248, %100 : vector<2x1x256xf32>
    %250 = arith.mulf %247, %249 : vector<2x1x256xf32>
    %251 = arith.extui %245 : vector<2x1x256xi1> to vector<2x1x256xi32>
    %252 = arith.sitofp %251 : vector<2x1x256xi32> to vector<2x1x256xf32>
    %253 = arith.mulf %252, %100 : vector<2x1x256xf32>
    %254 = arith.addf %250, %253 : vector<2x1x256xf32>
    %c241_i32 = arith.constant 241 : i32
    %255 = tpu.dynamic_rotate %70 by %c241_i32 dim 2 : vector<2x3x256xf32>, i32 -> vector<2x3x256xf32>
    %256 = vector.broadcast %125 : vector<2x1x256xf32> to vector<2x3x256xf32>
    %257 = arith.mulf %256, %255 : vector<2x3x256xf32>
    %c240_i32 = arith.constant 240 : i32
    %258 = tpu.dynamic_rotate %70 by %c240_i32 dim 2 : vector<2x3x256xf32>, i32 -> vector<2x3x256xf32>
    %259 = vector.broadcast %142 : vector<2x1x256xf32> to vector<2x3x256xf32>
    %260 = arith.mulf %259, %258 : vector<2x3x256xf32>
    %261 = arith.addf %257, %260 : vector<2x3x256xf32>
    %c239_i32 = arith.constant 239 : i32
    %262 = tpu.dynamic_rotate %70 by %c239_i32 dim 2 : vector<2x3x256xf32>, i32 -> vector<2x3x256xf32>
    %263 = vector.broadcast %165 : vector<2x1x256xf32> to vector<2x3x256xf32>
    %264 = arith.mulf %263, %262 : vector<2x3x256xf32>
    %265 = arith.addf %261, %264 : vector<2x3x256xf32>
    %266 = vector.broadcast %254 : vector<2x1x256xf32> to vector<2x3x256xf32>
    %267 = arith.mulf %266, %265 : vector<2x3x256xf32>
    %268 = arith.addf %231, %267 : vector<2x3x256xf32>
    %269 = arith.subf %268, %70 : vector<2x3x256xf32>
    %270 = vector.broadcast %5 : vector<2x1x1xf32> to vector<2x3x256xf32>
    %271 = arith.mulf %270, %269 : vector<2x3x256xf32>
    %272 = arith.addf %70, %271 : vector<2x3x256xf32>
    %c0_i32_44 = arith.constant 0 : i32
    %273 = vector.broadcast %c0_i32_44 : i32 to vector<1x1x256xi32>
    %274 = arith.cmpi eq, %14, %273 : vector<1x1x256xi32>
    %c15_i32_45 = arith.constant 15 : i32
    %275 = vector.broadcast %c15_i32_45 : i32 to vector<1x1x256xi32>
    %276 = arith.cmpi eq, %14, %275 : vector<1x1x256xi32>
    %c0_i32_46 = arith.constant 0 : i32
    %277 = vector.broadcast %c0_i32_46 : i32 to vector<1x1x256xi32>
    %278 = arith.cmpi eq, %16, %277 : vector<1x1x256xi32>
    %c15_i32_47 = arith.constant 15 : i32
    %279 = vector.broadcast %c15_i32_47 : i32 to vector<1x1x256xi32>
    %280 = arith.cmpi eq, %16, %279 : vector<1x1x256xi32>
    %c1_i32_48 = arith.constant 1 : i32
    %281 = tpu.dynamic_rotate %272 by %c1_i32_48 dim 2 : vector<2x3x256xf32>, i32 -> vector<2x3x256xf32>
    %c255_i32_49 = arith.constant 255 : i32
    %282 = tpu.dynamic_rotate %272 by %c255_i32_49 dim 2 : vector<2x3x256xf32>, i32 -> vector<2x3x256xf32>
    %283 = vector.shape_cast %274 : vector<1x1x256xi1> to vector<1x1x256xi1>
    %284 = vector.broadcast %283 : vector<1x1x256xi1> to vector<2x3x256xi1>
    %285 = arith.select %284, %282, %281 : vector<2x3x256xi1>, vector<2x3x256xf32>
    %286 = vector.shape_cast %276 : vector<1x1x256xi1> to vector<1x1x256xi1>
    %287 = vector.broadcast %286 : vector<1x1x256xi1> to vector<2x3x256xi1>
    %288 = arith.select %287, %281, %282 : vector<2x3x256xi1>, vector<2x3x256xf32>
    %289 = arith.addf %285, %288 : vector<2x3x256xf32>
    %290 = vector.broadcast %10 : vector<2x1x1xf32> to vector<2x3x256xf32>
    %291 = arith.mulf %290, %272 : vector<2x3x256xf32>
    %292 = vector.broadcast %9 : vector<2x1x1xf32> to vector<2x3x256xf32>
    %293 = arith.mulf %292, %289 : vector<2x3x256xf32>
    %294 = arith.addf %291, %293 : vector<2x3x256xf32>
    %c16_i32_50 = arith.constant 16 : i32
    %295 = tpu.dynamic_rotate %294 by %c16_i32_50 dim 2 : vector<2x3x256xf32>, i32 -> vector<2x3x256xf32>
    %c240_i32_51 = arith.constant 240 : i32
    %296 = tpu.dynamic_rotate %294 by %c240_i32_51 dim 2 : vector<2x3x256xf32>, i32 -> vector<2x3x256xf32>
    %297 = vector.shape_cast %278 : vector<1x1x256xi1> to vector<1x1x256xi1>
    %298 = vector.broadcast %297 : vector<1x1x256xi1> to vector<2x3x256xi1>
    %299 = arith.select %298, %296, %295 : vector<2x3x256xi1>, vector<2x3x256xf32>
    %300 = vector.shape_cast %280 : vector<1x1x256xi1> to vector<1x1x256xi1>
    %301 = vector.broadcast %300 : vector<1x1x256xi1> to vector<2x3x256xi1>
    %302 = arith.select %301, %295, %296 : vector<2x3x256xi1>, vector<2x3x256xf32>
    %303 = arith.addf %299, %302 : vector<2x3x256xf32>
    %304 = vector.broadcast %10 : vector<2x1x1xf32> to vector<2x3x256xf32>
    %305 = arith.mulf %304, %294 : vector<2x3x256xf32>
    %306 = vector.broadcast %9 : vector<2x1x1xf32> to vector<2x3x256xf32>
    %307 = arith.mulf %306, %303 : vector<2x3x256xf32>
    %308 = arith.addf %305, %307 : vector<2x3x256xf32>
    %309 = arith.subf %308, %272 : vector<2x3x256xf32>
    %310 = vector.broadcast %8 : vector<2x1x1xf32> to vector<2x3x256xf32>
    %311 = arith.mulf %310, %309 : vector<2x3x256xf32>
    %312 = arith.addf %272, %311 : vector<2x3x256xf32>
    %c0_52 = arith.constant 0 : index
    %c0_53 = arith.constant 0 : index
    %c0_54 = arith.constant 0 : index
    %313 = vector.load %arg3[%c0_52, %c0_53, %c0_54] : memref<2x3x256xf32, #tpu.memory_space<vmem>>, vector<2x3x256xf32>
    tpu.vector_store %arg3[%c0_52, %c0_53, %c0_54], %312 {strides = array<i32>} : memref<2x3x256xf32, #tpu.memory_space<vmem>>, vector<2x3x256xf32>,
    return
  }
  func.func @transform_0(%arg0: i32) -> (i32, i32, i32) {
    %c0_i32 = arith.constant 0 : i32
    %c0_i32_0 = arith.constant 0 : i32
    %c0_i32_1 = arith.constant 0 : i32
    return %arg0, %c0_i32, %c0_i32_0 : i32, i32, i32
  }
  func.func @transform_1(%arg0: i32) -> (i32, i32, i32) {
    %c0_i32 = arith.constant 0 : i32
    %c0_i32_0 = arith.constant 0 : i32
    %c0_i32_1 = arith.constant 0 : i32
    return %arg0, %c0_i32, %c0_i32_0 : i32, i32, i32
  }
  func.func @transform_2(%arg0: i32) -> (i32, i32, i32) {
    %c0_i32 = arith.constant 0 : i32
    %c0_i32_0 = arith.constant 0 : i32
    %c0_i32_1 = arith.constant 0 : i32
    return %arg0, %c0_i32, %c0_i32_0 : i32, i32, i32
  }
}

</mosaic_0001>

<llo_original>
// kernel: tpu_custom_call.1
$region0: #{tpu_custom_call.1}
  #allocation0 [shape = 'u32[]', space=smem, size = 0x4, offset = 0x4, fixed_abs, tag = 'smem constant byte address 0x4 - core index']
  #allocation1 [shape = 'u32[144,128]{1,0:T(1,128)}', space=vmem, size = 0x12000, scoped, tag = 'internal scratch']
  %s0 = inlined_call_operand.vmem [shape: f32[2,1,10], index: 0, kind: input, shape index: {}]
  %s1 = inlined_call_operand.vmem [shape: f32[2,3,256], index: 1, kind: input, shape index: {}, may-alias: {1,2}]
  %s2 = inlined_call_operand.vmem [shape: f32[2,3,256], index: 2, kind: output, shape index: {}, may-alias: {1,2}]
  %s3 = sld [smem:[#allocation0]]
  $region18: #{tpu_custom_call.1} parent=0
    _
  %s5 = ssub.s32 1, %s3
  %s6 = scalar_select 0, %s5, %s3
  // Predicated region
  $region2: #{tpu_custom_call.1} parent=0 // pred_check
    _
  $region3: #{tpu_custom_call.1} parent=0 // pred_check_branch
    %8 = sbr.rel (0) target = $region5
  $region4: #{tpu_custom_call.1} parent=0 // pred_region
    _
  $region5: #{tpu_custom_call.1} parent=0 // pred_fallthru
    _
  // Predicated region
  $region6: #{tpu_custom_call.1} parent=0 // pred_check
    _
  $region7: #{tpu_custom_call.1} parent=0 // pred_check_branch
    %10 = sbr.rel (0) target = $region9
  $region8: #{tpu_custom_call.1} parent=0 // pred_region
    _
  $region9: #{tpu_custom_call.1} parent=0 // pred_fallthru
    _
  %v11 = vld [vmem:[%s0] sm:$0x1]
  %v12 = vld [vmem:[%s0 + $0x1] sm:$0x1]
  %v13 = vld [vmem:[%s1] sm:$0x77]
  %v14 = vld [vmem:[%s1 + $0x8] sm:$0x77]
  %v15 = vlaneseq
  %v16 = vand.u32 %v15, 127
  %v17 = vadd.s32 %v16, 128
  %v18 = vand.u32 %v16, 15
  %v19 = vand.u32 %v17, 15
  %v20 = vshra.s32 %v16, 4
  %v21 = vshra.s32 %v17, 4
  %v22 = vcvt.s32.f32 %v20
  %v23 = vcvt.s32.f32 %v21
  %v24 = vcvt.s32.f32 %v18
  %v25 = vcvt.s32.f32 %v19
  %v28 = vlaneseq
  %v29 = vshrl.u32 %v28, 7
  %v30 = vsub.s32 0, %v29
  %v31 = vrot.slane %v11, %v30
  %v32 = vlaneseq
  %v33 = vshrl.u32 %v32, 7
  %v34 = vsub.s32 0, %v33
  %v35 = vrot.slane %v12, %v34
  %36 = vset.pattern.permute.xlu0 1
  %37 = vperm.xlu0 %36, %v31
  %v38 = vpop.permute.xlu0 %37
  %40 = vset.pattern.permute.xlu0 1
  %41 = vperm.xlu0 %40, %v35
  %v42 = vpop.permute.xlu0 %41
  %v44 = vmul.f32 %v13, %v38
  %v45 = vmul.f32 %v14, %v42
  %v46 = vmax.f32 %v44, 0.0
  %v47 = vmax.f32 %v45, 0.0
  %v48 = vmin.f32 %v46, 1.0
  %v49 = vmin.f32 %v47, 1.0
  %v50 = vmul.f32 %v48, 0.299
  %v51 = vmul.f32 %v49, 0.299
  %v52 = vmul.f32 %v48, 0.587
  %v53 = vmul.f32 %v49, 0.587
  %v56 = vrot.slane %v52, 5
  %v57 = vrot.slane %v56, 4
  %v58 = vrot.slane %v53, 5
  %v59 = vrot.slane %v58, 4
  %v62 = vadd.f32 %v50, %v57
  %v63 = vadd.f32 %v51, %v59
  %v64 = vmul.f32 %v48, 0.114
  %v65 = vmul.f32 %v49, 0.114
  %v68 = vrot.slane %v64, 6
  %v69 = vrot.slane %v68, 4
  %v70 = vrot.slane %v65, 6
  %v71 = vrot.slane %v70, 4
  %v74 = vadd.f32 %v62, %v69
  %v75 = vadd.f32 %v63, %v71
  %v78 = vlaneseq
  %v79 = vshrl.u32 %v78, 7
  %v80 = vsub.s32 0, %v79
  %v81 = vrot.slane %v74, %v80
  %v82 = vlaneseq
  %v83 = vshrl.u32 %v82, 7
  %v84 = vsub.s32 4, %v83
  %v85 = vrot.slane %v74, %v84
  %v86 = vlaneseq
  %v87 = vshrl.u32 %v86, 7
  %v88 = vsub.s32 0, %v87
  %v89 = vrot.slane %v75, %v88
  %v90 = vlaneseq
  %v91 = vshrl.u32 %v90, 7
  %v92 = vsub.s32 4, %v91
  %v93 = vrot.slane %v75, %v92
  %vm98 = vcmask 1040384
  %v99 = vsel %vm98, %v81, 0.0
  %v100 = vsel %vm98, %v85, 0.0
  %v101 = vadd.f32 %v99, %v100
  %102 = vadd.xlane.f32.xlu0 %v101
  %v103 = vpop.xlane.xlu0 %102
  %v104 = vsel %vm98, %v89, 0.0
  %v105 = vsel %vm98, %v93, 0.0
  %v106 = vadd.f32 %v104, %v105
  %107 = vadd.xlane.f32.xlu0 %v106
  %v108 = vpop.xlane.xlu0 %107
  %v109 = vmul.f32 %v103, 0.00390625
  %v110 = vmul.f32 %v108, 0.00390625
  %111 = vset.pattern.permute.xlu0 2
  %112 = vperm.xlu0 %111, %v31
  %v113 = vpop.permute.xlu0 %112
  %115 = vset.pattern.permute.xlu0 2
  %116 = vperm.xlu0 %115, %v35
  %v117 = vpop.permute.xlu0 %116
  %v119 = vmul.f32 %v48, %v113
  %v120 = vmul.f32 %v49, %v117
  %v121 = vsub.f32 1.0, %v11
  %v122 = vsub.f32 1.0, %v12
  %v123 = vmul.f32 %v121, %v109
  %v124 = vmul.f32 %v122, %v110
  %v127 = vlaneseq
  %v128 = vshrl.u32 %v127, 7
  %v129 = vsub.s32 0, %v128
  %v130 = vrot.slane %v123, %v129
  %v131 = vlaneseq
  %v132 = vshrl.u32 %v131, 7
  %v133 = vsub.s32 0, %v132
  %v134 = vrot.slane %v124, %v133
  %135 = vset.pattern.permute.xlu0 2
  %136 = vperm.xlu0 %135, %v130
  %v137 = vpop.permute.xlu0 %136
  %139 = vset.pattern.permute.xlu0 2
  %140 = vperm.xlu0 %139, %v134
  %v141 = vpop.permute.xlu0 %140
  %v143 = vadd.f32 %v119, %v137
  %v144 = vadd.f32 %v120, %v141
  %v145 = vmax.f32 %v143, 0.0
  %v146 = vmax.f32 %v144, 0.0
  %v147 = vmin.f32 %v145, 1.0
  %v148 = vmin.f32 %v146, 1.0
  %v149 = vsub.f32 %v147, %v13
  %v150 = vsub.f32 %v148, %v14
  %151 = vset.pattern.permute.xlu0 0
  %152 = vperm.xlu0 %151, %v31
  %v153 = vpop.permute.xlu0 %152
  %155 = vset.pattern.permute.xlu0 0
  %156 = vperm.xlu0 %155, %v35
  %v157 = vpop.permute.xlu0 %156
  %v159 = vmul.f32 %v153, %v149
  %v160 = vmul.f32 %v157, %v150
  %v161 = vadd.f32 %v13, %v159
  %v162 = vadd.f32 %v14, %v160
  %v163 = vmul.f32 %v161, 0.299
  %v164 = vmul.f32 %v162, 0.299
  %v165 = vmul.f32 %v161, 0.587
  %v166 = vmul.f32 %v162, 0.587
  %v169 = vrot.slane %v165, 5
  %v170 = vrot.slane %v169, 4
  %v171 = vrot.slane %v166, 5
  %v172 = vrot.slane %v171, 4
  %v175 = vadd.f32 %v163, %v170
  %v176 = vadd.f32 %v164, %v172
  %v177 = vmul.f32 %v161, 0.114
  %v178 = vmul.f32 %v162, 0.114
  %v181 = vrot.slane %v177, 6
  %v182 = vrot.slane %v181, 4
  %v183 = vrot.slane %v178, 6
  %v184 = vrot.slane %v183, 4
  %v187 = vadd.f32 %v175, %v182
  %v188 = vadd.f32 %v176, %v184
  %v191 = vlaneseq
  %v192 = vshrl.u32 %v191, 7
  %v193 = vsub.s32 0, %v192
  %v194 = vrot.slane %v187, %v193
  %v195 = vlaneseq
  %v196 = vshrl.u32 %v195, 7
  %v197 = vsub.s32 4, %v196
  %v198 = vrot.slane %v187, %v197
  %v199 = vlaneseq
  %v200 = vshrl.u32 %v199, 7
  %v201 = vsub.s32 0, %v200
  %v202 = vrot.slane %v188, %v201
  %v203 = vlaneseq
  %v204 = vshrl.u32 %v203, 7
  %v205 = vsub.s32 4, %v204
  %v206 = vrot.slane %v188, %v205
  %v211 = vlaneseq
  %v212 = vshrl.u32 %v211, 7
  %v213 = vsub.s32 0, %v212
  %v214 = vrot.slane %v194, %v213
  %v215 = vlaneseq
  %v216 = vshrl.u32 %v215, 7
  %v217 = vsub.s32 0, %v216
  %v218 = vrot.slane %v198, %v217
  %v219 = vlaneseq
  %v220 = vshrl.u32 %v219, 7
  %v221 = vsub.s32 0, %v220
  %v222 = vrot.slane %v202, %v221
  %v223 = vlaneseq
  %v224 = vshrl.u32 %v223, 7
  %v225 = vsub.s32 0, %v224
  %v226 = vrot.slane %v206, %v225
  %v229 = vcombine.high %v161, %v161
  %v230 = vcombine.high %v162, %v162
  %v233 = vsub.f32 %v214, %v161
  %v234 = vsub.f32 %v218, %v229
  %v235 = vsub.f32 %v222, %v162
  %v236 = vsub.f32 %v226, %v230
  %237 = vset.pattern.permute.xlu0 3
  %238 = vperm.xlu0 %237, %v31
  %v239 = vpop.permute.xlu0 %238
  %241 = vset.pattern.permute.xlu0 3
  %242 = vperm.xlu0 %241, %v35
  %v243 = vpop.permute.xlu0 %242
  %v245 = vmul.f32 %v239, %v233
  %v246 = vmul.f32 %v239, %v234
  %v247 = vmul.f32 %v243, %v235
  %v248 = vmul.f32 %v243, %v236
  %v253 = vcombine.low %v245, %v246
  %v254 = vcombine.low %v247, %v248
  %v257 = vadd.f32 %v161, %v253
  %v258 = vadd.f32 %v162, %v254
  %v259 = vsub.f32 %v24, 7.5
  %v260 = vsub.f32 %v25, 7.5
  %261 = vset.pattern.permute.xlu0 5
  %262 = vperm.xlu0 %261, %v11
  %v263 = vpop.permute.xlu0 %262
  %v265 = vlaneseq
  %v266 = vshrl.u32 %v265, 7
  %v267 = vsub.s32 0, %v266
  %v268 = vrot.slane %v263, %v267
  %269 = vset.pattern.permute.xlu0 5
  %270 = vperm.xlu0 %269, %v12
  %v271 = vpop.permute.xlu0 %270
  %v273 = vlaneseq
  %v274 = vshrl.u32 %v273, 7
  %v275 = vsub.s32 0, %v274
  %v276 = vrot.slane %v271, %v275
  %v277 = vmul.f32 %v268, %v259
  %v278 = vmul.f32 %v268, %v260
  %v279 = vmul.f32 %v276, %v259
  %v280 = vmul.f32 %v276, %v260
  %v281 = vsub.f32 %v22, 7.5
  %v282 = vsub.f32 %v23, 7.5
  %283 = vset.pattern.permute.xlu0 6
  %284 = vperm.xlu0 %283, %v11
  %v285 = vpop.permute.xlu0 %284
  %v287 = vlaneseq
  %v288 = vshrl.u32 %v287, 7
  %v289 = vsub.s32 0, %v288
  %v290 = vrot.slane %v285, %v289
  %291 = vset.pattern.permute.xlu0 6
  %292 = vperm.xlu0 %291, %v12
  %v293 = vpop.permute.xlu0 %292
  %v295 = vlaneseq
  %v296 = vshrl.u32 %v295, 7
  %v297 = vsub.s32 0, %v296
  %v298 = vrot.slane %v293, %v297
  %v299 = vmul.f32 %v290, %v281
  %v300 = vmul.f32 %v290, %v282
  %v301 = vmul.f32 %v298, %v281
  %v302 = vmul.f32 %v298, %v282
  %v303 = vadd.f32 %v277, %v299
  %v304 = vadd.f32 %v278, %v300
  %v305 = vadd.f32 %v279, %v301
  %v306 = vadd.f32 %v280, %v302
  %v307 = vadd.f32 %v303, 7.5
  %v308 = vadd.f32 %v304, 7.5
  %v309 = vadd.f32 %v305, 7.5
  %v310 = vadd.f32 %v306, 7.5
  %v311 = vmul.f32 %v268, %v281
  %v312 = vmul.f32 %v268, %v282
  %v313 = vmul.f32 %v276, %v281
  %v314 = vmul.f32 %v276, %v282
  %v315 = vmul.f32 %v290, %v259
  %v316 = vmul.f32 %v290, %v260
  %v317 = vmul.f32 %v298, %v259
  %v318 = vmul.f32 %v298, %v260
  %v319 = vsub.f32 %v311, %v315
  %v320 = vsub.f32 %v312, %v316
  %v321 = vsub.f32 %v313, %v317
  %v322 = vsub.f32 %v314, %v318
  %v323 = vadd.f32 %v319, 7.5
  %v324 = vadd.f32 %v320, 7.5
  %v325 = vadd.f32 %v321, 7.5
  %v326 = vadd.f32 %v322, 7.5
  %v327 = vfloor.f32 %v307
  %v328 = vfloor.f32 %v308
  %v329 = vfloor.f32 %v309
  %v330 = vfloor.f32 %v310
  %v331 = vfloor.f32 %v323
  %v332 = vfloor.f32 %v324
  %v333 = vfloor.f32 %v325
  %v334 = vfloor.f32 %v326
  %v335 = vsub.f32 %v307, %v327
  %v336 = vsub.f32 %v308, %v328
  %v337 = vsub.f32 %v309, %v329
  %v338 = vsub.f32 %v310, %v330
  %v339 = vsub.f32 %v323, %v331
  %v340 = vsub.f32 %v324, %v332
  %v341 = vsub.f32 %v325, %v333
  %v342 = vsub.f32 %v326, %v334
  %v343 = vcvt.f32.s32.to.zero.pseudo %v327
  %v344 = vcvt.f32.s32.to.zero.pseudo %v328
  %v345 = vcvt.f32.s32.to.zero.pseudo %v329
  %v346 = vcvt.f32.s32.to.zero.pseudo %v330
  %v347 = vcvt.f32.s32.to.zero.pseudo %v331
  %v348 = vcvt.f32.s32.to.zero.pseudo %v332
  %v349 = vcvt.f32.s32.to.zero.pseudo %v333
  %v350 = vcvt.f32.s32.to.zero.pseudo %v334
  %v351 = vadd.s32 %v18, 4294967295
  %v352 = vadd.s32 %v19, 4294967295
  %vm353 = vcmp.eq.s32.totalorder %v343, %v351
  %vm354 = vcmp.eq.s32.totalorder %v344, %v352
  %vm355 = vcmp.eq.s32.totalorder %v345, %v351
  %vm356 = vcmp.eq.s32.totalorder %v346, %v352
  %v357 = vadd.s32 %v343, 1
  %v358 = vadd.s32 %v344, 1
  %v359 = vadd.s32 %v345, 1
  %v360 = vadd.s32 %v346, 1
  %vm361 = vcmp.eq.s32.totalorder %v357, %v351
  %vm362 = vcmp.eq.s32.totalorder %v358, %v352
  %vm363 = vcmp.eq.s32.totalorder %v359, %v351
  %vm364 = vcmp.eq.s32.totalorder %v360, %v352
  %vm365 = vcmp.ge.s32.totalorder %v351, 0
  %vm366 = vcmp.ge.s32.totalorder %v352, 0
  %v367 = vsel %vm365, 1, 0
  %v368 = vsel %vm366, 1, 0
  %vm369 = vcmp.eq.s32.totalorder %v367, 1
  %vm370 = vcmp.eq.s32.totalorder %v368, 1
  %vm371 = vmand %vm353, %vm369
  %vm372 = vmand %vm354, %vm370
  %vm373 = vmand %vm355, %vm369
  %vm374 = vmand %vm356, %vm370
  %vm375 = vmand %vm361, %vm369
  %vm376 = vmand %vm362, %vm370
  %vm377 = vmand %vm363, %vm369
  %vm378 = vmand %vm364, %vm370
  %v379 = vsel %vm371, 1, 0
  %v380 = vsel %vm372, 1, 0
  %v381 = vsel %vm373, 1, 0
  %v382 = vsel %vm374, 1, 0
  %v383 = vcvt.s32.f32 %v379
  %v384 = vcvt.s32.f32 %v380
  %v385 = vcvt.s32.f32 %v381
  %v386 = vcvt.s32.f32 %v382
  %v387 = vsub.f32 1.0, %v335
  %v388 = vsub.f32 1.0, %v336
  %v389 = vsub.f32 1.0, %v337
  %v390 = vsub.f32 1.0, %v338
  %v391 = vmul.f32 %v383, %v387
  %v392 = vmul.f32 %v384, %v388
  %v393 = vmul.f32 %v385, %v389
  %v394 = vmul.f32 %v386, %v390
  %v395 = vsel %vm375, 1, 0
  %v396 = vsel %vm376, 1, 0
  %v397 = vsel %vm377, 1, 0
  %v398 = vsel %vm378, 1, 0
  %v399 = vcvt.s32.f32 %v395
  %v400 = vcvt.s32.f32 %v396
  %v401 = vcvt.s32.f32 %v397
  %v402 = vcvt.s32.f32 %v398
  %v403 = vmul.f32 %v399, %v335
  %v404 = vmul.f32 %v400, %v336
  %v405 = vmul.f32 %v401, %v337
  %v406 = vmul.f32 %v402, %v338
  %v407 = vadd.f32 %v391, %v403
  %v408 = vadd.f32 %v392, %v404
  %v409 = vadd.f32 %v393, %v405
  %v410 = vadd.f32 %v394, %v406
  %vm411 = vcmp.eq.s32.totalorder %v343, %v18
  %vm412 = vcmp.eq.s32.totalorder %v344, %v19
  %vm413 = vcmp.eq.s32.totalorder %v345, %v18
  %vm414 = vcmp.eq.s32.totalorder %v346, %v19
  %vm415 = vcmp.eq.s32.totalorder %v357, %v18
  %vm416 = vcmp.eq.s32.totalorder %v358, %v19
  %vm417 = vcmp.eq.s32.totalorder %v359, %v18
  %vm418 = vcmp.eq.s32.totalorder %v360, %v19
  %v419 = vsel %vm411, 1, 0
  %v420 = vsel %vm412, 1, 0
  %v421 = vsel %vm413, 1, 0
  %v422 = vsel %vm414, 1, 0
  %v423 = vcvt.s32.f32 %v419
  %v424 = vcvt.s32.f32 %v420
  %v425 = vcvt.s32.f32 %v421
  %v426 = vcvt.s32.f32 %v422
  %v427 = vmul.f32 %v423, %v387
  %v428 = vmul.f32 %v424, %v388
  %v429 = vmul.f32 %v425, %v389
  %v430 = vmul.f32 %v426, %v390
  %v431 = vsel %vm415, 1, 0
  %v432 = vsel %vm416, 1, 0
  %v433 = vsel %vm417, 1, 0
  %v434 = vsel %vm418, 1, 0
  %v435 = vcvt.s32.f32 %v431
  %v436 = vcvt.s32.f32 %v432
  %v437 = vcvt.s32.f32 %v433
  %v438 = vcvt.s32.f32 %v434
  %v439 = vmul.f32 %v435, %v335
  %v440 = vmul.f32 %v436, %v336
  %v441 = vmul.f32 %v437, %v337
  %v442 = vmul.f32 %v438, %v338
  %v443 = vadd.f32 %v427, %v439
  %v444 = vadd.f32 %v428, %v440
  %v445 = vadd.f32 %v429, %v441
  %v446 = vadd.f32 %v430, %v442
  %v447 = vadd.s32 %v18, 1
  %v448 = vadd.s32 %v19, 1
  %vm449 = vcmp.eq.s32.totalorder %v343, %v447
  %vm450 = vcmp.eq.s32.totalorder %v344, %v448
  %vm451 = vcmp.eq.s32.totalorder %v345, %v447
  %vm452 = vcmp.eq.s32.totalorder %v346, %v448
  %vm453 = vcmp.eq.s32.totalorder %v357, %v447
  %vm454 = vcmp.eq.s32.totalorder %v358, %v448
  %vm455 = vcmp.eq.s32.totalorder %v359, %v447
  %vm456 = vcmp.eq.s32.totalorder %v360, %v448
  %vm457 = vcmp.lt.s32.totalorder %v447, 16
  %vm458 = vcmp.lt.s32.totalorder %v448, 16
  %v459 = vsel %vm457, 1, 0
  %v460 = vsel %vm458, 1, 0
  %vm461 = vcmp.eq.s32.totalorder %v459, 1
  %vm462 = vcmp.eq.s32.totalorder %v460, 1
  %vm463 = vmand %vm449, %vm461
  %vm464 = vmand %vm450, %vm462
  %vm465 = vmand %vm451, %vm461
  %vm466 = vmand %vm452, %vm462
  %vm467 = vmand %vm453, %vm461
  %vm468 = vmand %vm454, %vm462
  %vm469 = vmand %vm455, %vm461
  %vm470 = vmand %vm456, %vm462
  %v471 = vsel %vm463, 1, 0
  %v472 = vsel %vm464, 1, 0
  %v473 = vsel %vm465, 1, 0
  %v474 = vsel %vm466, 1, 0
  %v475 = vcvt.s32.f32 %v471
  %v476 = vcvt.s32.f32 %v472
  %v477 = vcvt.s32.f32 %v473
  %v478 = vcvt.s32.f32 %v474
  %v479 = vmul.f32 %v475, %v387
  %v480 = vmul.f32 %v476, %v388
  %v481 = vmul.f32 %v477, %v389
  %v482 = vmul.f32 %v478, %v390
  %v483 = vsel %vm467, 1, 0
  %v484 = vsel %vm468, 1, 0
  %v485 = vsel %vm469, 1, 0
  %v486 = vsel %vm470, 1, 0
  %v487 = vcvt.s32.f32 %v483
  %v488 = vcvt.s32.f32 %v484
  %v489 = vcvt.s32.f32 %v485
  %v490 = vcvt.s32.f32 %v486
  %v491 = vmul.f32 %v487, %v335
  %v492 = vmul.f32 %v488, %v336
  %v493 = vmul.f32 %v489, %v337
  %v494 = vmul.f32 %v490, %v338
  %v495 = vadd.f32 %v479, %v491
  %v496 = vadd.f32 %v480, %v492
  %v497 = vadd.f32 %v481, %v493
  %v498 = vadd.f32 %v482, %v494
  %v499 = vadd.s32 %v20, 4294967295
  %v500 = vadd.s32 %v21, 4294967295
  %vm501 = vcmp.eq.s32.totalorder %v347, %v499
  %vm502 = vcmp.eq.s32.totalorder %v348, %v500
  %vm503 = vcmp.eq.s32.totalorder %v349, %v499
  %vm504 = vcmp.eq.s32.totalorder %v350, %v500
  %v505 = vadd.s32 %v347, 1
  %v506 = vadd.s32 %v348, 1
  %v507 = vadd.s32 %v349, 1
  %v508 = vadd.s32 %v350, 1
  %vm509 = vcmp.eq.s32.totalorder %v505, %v499
  %vm510 = vcmp.eq.s32.totalorder %v506, %v500
  %vm511 = vcmp.eq.s32.totalorder %v507, %v499
  %vm512 = vcmp.eq.s32.totalorder %v508, %v500
  %vm513 = vcmp.ge.s32.totalorder %v499, 0
  %vm514 = vcmp.ge.s32.totalorder %v500, 0
  %v515 = vsel %vm513, 1, 0
  %v516 = vsel %vm514, 1, 0
  %vm517 = vcmp.eq.s32.totalorder %v515, 1
  %vm518 = vcmp.eq.s32.totalorder %v516, 1
  %vm519 = vmand %vm501, %vm517
  %vm520 = vmand %vm502, %vm518
  %vm521 = vmand %vm503, %vm517
  %vm522 = vmand %vm504, %vm518
  %vm523 = vmand %vm509, %vm517
  %vm524 = vmand %vm510, %vm518
  %vm525 = vmand %vm511, %vm517
  %vm526 = vmand %vm512, %vm518
  %v527 = vsel %vm519, 1, 0
  %v528 = vsel %vm520, 1, 0
  %v529 = vsel %vm521, 1, 0
  %v530 = vsel %vm522, 1, 0
  %v531 = vcvt.s32.f32 %v527
  %v532 = vcvt.s32.f32 %v528
  %v533 = vcvt.s32.f32 %v529
  %v534 = vcvt.s32.f32 %v530
  %v535 = vsub.f32 1.0, %v339
  %v536 = vsub.f32 1.0, %v340
  %v537 = vsub.f32 1.0, %v341
  %v538 = vsub.f32 1.0, %v342
  %v539 = vmul.f32 %v531, %v535
  %v540 = vmul.f32 %v532, %v536
  %v541 = vmul.f32 %v533, %v537
  %v542 = vmul.f32 %v534, %v538
  %v543 = vsel %vm523, 1, 0
  %v544 = vsel %vm524, 1, 0
  %v545 = vsel %vm525, 1, 0
  %v546 = vsel %vm526, 1, 0
  %v547 = vcvt.s32.f32 %v543
  %v548 = vcvt.s32.f32 %v544
  %v549 = vcvt.s32.f32 %v545
  %v550 = vcvt.s32.f32 %v546
  %v551 = vmul.f32 %v547, %v339
  %v552 = vmul.f32 %v548, %v340
  %v553 = vmul.f32 %v549, %v341
  %v554 = vmul.f32 %v550, %v342
  %v555 = vadd.f32 %v539, %v551
  %v556 = vadd.f32 %v540, %v552
  %v557 = vadd.f32 %v541, %v553
  %v558 = vadd.f32 %v542, %v554
  %v561 = vcombine.high %v257, %v257
  %v562 = vcombine.high %v258, %v258
  %565 = vrot.lane.b32.xlu0 %v257, 17
  %v566 = vpop.permute.xlu0 %565
  %567 = vrot.lane.b32.xlu0 %v258, 17
  %v568 = vpop.permute.xlu0 %567
  %569 = vrot.lane.b32.xlu0 %v561, 17
  %v570 = vpop.permute.xlu0 %569
  %571 = vrot.lane.b32.xlu0 %v562, 17
  %v572 = vpop.permute.xlu0 %571
  %vm573 = vcmp.lt.s32.totalorder %v16, 17
  %v574 = vsel %vm573, %v566, %v570
  %v575 = vsel %vm573, %v568, %v572
  %v576 = vsel %vm573, %v570, %v566
  %v577 = vsel %vm573, %v572, %v568
  %v578 = vmul.f32 %v407, %v576
  %v579 = vmul.f32 %v408, %v574
  %v580 = vmul.f32 %v409, %v577
  %v581 = vmul.f32 %v410, %v575
  %582 = vrot.lane.b32.xlu0 %v257, 16
  %v583 = vpop.permute.xlu0 %582
  %584 = vrot.lane.b32.xlu0 %v258, 16
  %v585 = vpop.permute.xlu0 %584
  %586 = vrot.lane.b32.xlu0 %v561, 16
  %v587 = vpop.permute.xlu0 %586
  %588 = vrot.lane.b32.xlu0 %v562, 16
  %v589 = vpop.permute.xlu0 %588
  %vm590 = vcmp.lt.s32.totalorder %v16, 16
  %v591 = vsel %vm590, %v583, %v587
  %v592 = vsel %vm590, %v585, %v589
  %v593 = vsel %vm590, %v587, %v583
  %v594 = vsel %vm590, %v589, %v585
  %v595 = vmul.f32 %v443, %v593
  %v596 = vmul.f32 %v444, %v591
  %v597 = vmul.f32 %v445, %v594
  %v598 = vmul.f32 %v446, %v592
  %v599 = vadd.f32 %v578, %v595
  %v600 = vadd.f32 %v579, %v596
  %v601 = vadd.f32 %v580, %v597
  %v602 = vadd.f32 %v581, %v598
  %603 = vrot.lane.b32.xlu0 %v257, 15
  %v604 = vpop.permute.xlu0 %603
  %605 = vrot.lane.b32.xlu0 %v258, 15
  %v606 = vpop.permute.xlu0 %605
  %607 = vrot.lane.b32.xlu0 %v561, 15
  %v608 = vpop.permute.xlu0 %607
  %609 = vrot.lane.b32.xlu0 %v562, 15
  %v610 = vpop.permute.xlu0 %609
  %vm611 = vcmp.lt.s32.totalorder %v16, 15
  %v612 = vsel %vm611, %v604, %v608
  %v613 = vsel %vm611, %v606, %v610
  %v614 = vsel %vm611, %v608, %v604
  %v615 = vsel %vm611, %v610, %v606
  %v616 = vmul.f32 %v495, %v614
  %v617 = vmul.f32 %v496, %v612
  %v618 = vmul.f32 %v497, %v615
  %v619 = vmul.f32 %v498, %v613
  %v620 = vadd.f32 %v599, %v616
  %v621 = vadd.f32 %v600, %v617
  %v622 = vadd.f32 %v601, %v618
  %v623 = vadd.f32 %v602, %v619
  %v624 = vmul.f32 %v555, %v620
  %v625 = vmul.f32 %v556, %v621
  %v626 = vmul.f32 %v557, %v622
  %v627 = vmul.f32 %v558, %v623
  %vm628 = vcmp.eq.s32.totalorder %v347, %v20
  %vm629 = vcmp.eq.s32.totalorder %v348, %v21
  %vm630 = vcmp.eq.s32.totalorder %v349, %v20
  %vm631 = vcmp.eq.s32.totalorder %v350, %v21
  %vm632 = vcmp.eq.s32.totalorder %v505, %v20
  %vm633 = vcmp.eq.s32.totalorder %v506, %v21
  %vm634 = vcmp.eq.s32.totalorder %v507, %v20
  %vm635 = vcmp.eq.s32.totalorder %v508, %v21
  %v636 = vsel %vm628, 1, 0
  %v637 = vsel %vm629, 1, 0
  %v638 = vsel %vm630, 1, 0
  %v639 = vsel %vm631, 1, 0
  %v640 = vcvt.s32.f32 %v636
  %v641 = vcvt.s32.f32 %v637
  %v642 = vcvt.s32.f32 %v638
  %v643 = vcvt.s32.f32 %v639
  %v644 = vmul.f32 %v640, %v535
  %v645 = vmul.f32 %v641, %v536
  %v646 = vmul.f32 %v642, %v537
  %v647 = vmul.f32 %v643, %v538
  %v648 = vsel %vm632, 1, 0
  %v649 = vsel %vm633, 1, 0
  %v650 = vsel %vm634, 1, 0
  %v651 = vsel %vm635, 1, 0
  %v652 = vcvt.s32.f32 %v648
  %v653 = vcvt.s32.f32 %v649
  %v654 = vcvt.s32.f32 %v650
  %v655 = vcvt.s32.f32 %v651
  %v656 = vmul.f32 %v652, %v339
  %v657 = vmul.f32 %v653, %v340
  %v658 = vmul.f32 %v654, %v341
  %v659 = vmul.f32 %v655, %v342
  %v660 = vadd.f32 %v644, %v656
  %v661 = vadd.f32 %v645, %v657
  %v662 = vadd.f32 %v646, %v658
  %v663 = vadd.f32 %v647, %v659
  %664 = vrot.lane.b32.xlu0 %v257, 1
  %v665 = vpop.permute.xlu0 %664
  %666 = vrot.lane.b32.xlu0 %v258, 1
  %v667 = vpop.permute.xlu0 %666
  %668 = vrot.lane.b32.xlu0 %v561, 1
  %v669 = vpop.permute.xlu0 %668
  %670 = vrot.lane.b32.xlu0 %v562, 1
  %v671 = vpop.permute.xlu0 %670
  %vm672 = vcmp.lt.s32.totalorder %v16, 1
  %v673 = vsel %vm672, %v665, %v669
  %v674 = vsel %vm672, %v667, %v671
  %v675 = vsel %vm672, %v669, %v665
  %v676 = vsel %vm672, %v671, %v667
  %v677 = vmul.f32 %v407, %v675
  %v678 = vmul.f32 %v408, %v673
  %v679 = vmul.f32 %v409, %v676
  %v680 = vmul.f32 %v410, %v674
  %v681 = vmul.f32 %v443, %v257
  %v682 = vmul.f32 %v444, %v561
  %v683 = vmul.f32 %v445, %v258
  %v684 = vmul.f32 %v446, %v562
  %v685 = vadd.f32 %v677, %v681
  %v686 = vadd.f32 %v678, %v682
  %v687 = vadd.f32 %v679, %v683
  %v688 = vadd.f32 %v680, %v684
  %689 = vrot.lane.b32.xlu0 %v257, 127
  %v690 = vpop.permute.xlu0 %689
  %691 = vrot.lane.b32.xlu0 %v258, 127
  %v692 = vpop.permute.xlu0 %691
  %693 = vrot.lane.b32.xlu0 %v561, 127
  %v694 = vpop.permute.xlu0 %693
  %695 = vrot.lane.b32.xlu0 %v562, 127
  %v696 = vpop.permute.xlu0 %695
  %vm697 = vcmp.lt.s32.totalorder %v16, 127
  %v698 = vsel %vm697, %v690, %v694
  %v699 = vsel %vm697, %v692, %v696
  %v700 = vsel %vm697, %v694, %v690
  %v701 = vsel %vm697, %v696, %v692
  %v702 = vmul.f32 %v495, %v698
  %v703 = vmul.f32 %v496, %v700
  %v704 = vmul.f32 %v497, %v699
  %v705 = vmul.f32 %v498, %v701
  %v706 = vadd.f32 %v685, %v702
  %v707 = vadd.f32 %v686, %v703
  %v708 = vadd.f32 %v687, %v704
  %v709 = vadd.f32 %v688, %v705
  %v710 = vmul.f32 %v660, %v706
  %v711 = vmul.f32 %v661, %v707
  %v712 = vmul.f32 %v662, %v708
  %v713 = vmul.f32 %v663, %v709
  %v714 = vadd.f32 %v624, %v710
  %v715 = vadd.f32 %v625, %v711
  %v716 = vadd.f32 %v626, %v712
  %v717 = vadd.f32 %v627, %v713
  %v718 = vadd.s32 %v20, 1
  %v719 = vadd.s32 %v21, 1
  %vm720 = vcmp.eq.s32.totalorder %v347, %v718
  %vm721 = vcmp.eq.s32.totalorder %v348, %v719
  %vm722 = vcmp.eq.s32.totalorder %v349, %v718
  %vm723 = vcmp.eq.s32.totalorder %v350, %v719
  %vm724 = vcmp.eq.s32.totalorder %v505, %v718
  %vm725 = vcmp.eq.s32.totalorder %v506, %v719
  %vm726 = vcmp.eq.s32.totalorder %v507, %v718
  %vm727 = vcmp.eq.s32.totalorder %v508, %v719
  %vm728 = vcmp.lt.s32.totalorder %v718, 16
  %vm729 = vcmp.lt.s32.totalorder %v719, 16
  %v730 = vsel %vm728, 1, 0
  %v731 = vsel %vm729, 1, 0
  %vm732 = vcmp.eq.s32.totalorder %v730, 1
  %vm733 = vcmp.eq.s32.totalorder %v731, 1
  %vm734 = vmand %vm720, %vm732
  %vm735 = vmand %vm721, %vm733
  %vm736 = vmand %vm722, %vm732
  %vm737 = vmand %vm723, %vm733
  %vm738 = vmand %vm724, %vm732
  %vm739 = vmand %vm725, %vm733
  %vm740 = vmand %vm726, %vm732
  %vm741 = vmand %vm727, %vm733
  %v742 = vsel %vm734, 1, 0
  %v743 = vsel %vm735, 1, 0
  %v744 = vsel %vm736, 1, 0
  %v745 = vsel %vm737, 1, 0
  %v746 = vcvt.s32.f32 %v742
  %v747 = vcvt.s32.f32 %v743
  %v748 = vcvt.s32.f32 %v744
  %v749 = vcvt.s32.f32 %v745
  %v750 = vmul.f32 %v746, %v535
  %v751 = vmul.f32 %v747, %v536
  %v752 = vmul.f32 %v748, %v537
  %v753 = vmul.f32 %v749, %v538
  %v754 = vsel %vm738, 1, 0
  %v755 = vsel %vm739, 1, 0
  %v756 = vsel %vm740, 1, 0
  %v757 = vsel %vm741, 1, 0
  %v758 = vcvt.s32.f32 %v754
  %v759 = vcvt.s32.f32 %v755
  %v760 = vcvt.s32.f32 %v756
  %v761 = vcvt.s32.f32 %v757
  %v762 = vmul.f32 %v758, %v339
  %v763 = vmul.f32 %v759, %v340
  %v764 = vmul.f32 %v760, %v341
  %v765 = vmul.f32 %v761, %v342
  %v766 = vadd.f32 %v750, %v762
  %v767 = vadd.f32 %v751, %v763
  %v768 = vadd.f32 %v752, %v764
  %v769 = vadd.f32 %v753, %v765
  %770 = vrot.lane.b32.xlu0 %v257, 113
  %v771 = vpop.permute.xlu0 %770
  %772 = vrot.lane.b32.xlu0 %v258, 113
  %v773 = vpop.permute.xlu0 %772
  %774 = vrot.lane.b32.xlu0 %v561, 113
  %v775 = vpop.permute.xlu0 %774
  %776 = vrot.lane.b32.xlu0 %v562, 113
  %v777 = vpop.permute.xlu0 %776
  %vm778 = vcmp.lt.s32.totalorder %v16, 113
  %v779 = vsel %vm778, %v771, %v775
  %v780 = vsel %vm778, %v773, %v777
  %v781 = vsel %vm778, %v775, %v771
  %v782 = vsel %vm778, %v777, %v773
  %v783 = vmul.f32 %v407, %v779
  %v784 = vmul.f32 %v408, %v781
  %v785 = vmul.f32 %v409, %v780
  %v786 = vmul.f32 %v410, %v782
  %787 = vrot.lane.b32.xlu0 %v257, 112
  %v788 = vpop.permute.xlu0 %787
  %789 = vrot.lane.b32.xlu0 %v258, 112
  %v790 = vpop.permute.xlu0 %789
  %791 = vrot.lane.b32.xlu0 %v561, 112
  %v792 = vpop.permute.xlu0 %791
  %793 = vrot.lane.b32.xlu0 %v562, 112
  %v794 = vpop.permute.xlu0 %793
  %vm795 = vcmp.lt.s32.totalorder %v16, 112
  %v796 = vsel %vm795, %v788, %v792
  %v797 = vsel %vm795, %v790, %v794
  %v798 = vsel %vm795, %v792, %v788
  %v799 = vsel %vm795, %v794, %v790
  %v800 = vmul.f32 %v443, %v796
  %v801 = vmul.f32 %v444, %v798
  %v802 = vmul.f32 %v445, %v797
  %v803 = vmul.f32 %v446, %v799
  %v804 = vadd.f32 %v783, %v800
  %v805 = vadd.f32 %v784, %v801
  %v806 = vadd.f32 %v785, %v802
  %v807 = vadd.f32 %v786, %v803
  %808 = vrot.lane.b32.xlu0 %v257, 111
  %v809 = vpop.permute.xlu0 %808
  %810 = vrot.lane.b32.xlu0 %v258, 111
  %v811 = vpop.permute.xlu0 %810
  %812 = vrot.lane.b32.xlu0 %v561, 111
  %v813 = vpop.permute.xlu0 %812
  %814 = vrot.lane.b32.xlu0 %v562, 111
  %v815 = vpop.permute.xlu0 %814
  %vm816 = vcmp.lt.s32.totalorder %v16, 111
  %v817 = vsel %vm816, %v809, %v813
  %v818 = vsel %vm816, %v811, %v815
  %v819 = vsel %vm816, %v813, %v809
  %v820 = vsel %vm816, %v815, %v811
  %v821 = vmul.f32 %v495, %v817
  %v822 = vmul.f32 %v496, %v819
  %v823 = vmul.f32 %v497, %v818
  %v824 = vmul.f32 %v498, %v820
  %v825 = vadd.f32 %v804, %v821
  %v826 = vadd.f32 %v805, %v822
  %v827 = vadd.f32 %v806, %v823
  %v828 = vadd.f32 %v807, %v824
  %v829 = vmul.f32 %v766, %v825
  %v830 = vmul.f32 %v767, %v826
  %v831 = vmul.f32 %v768, %v827
  %v832 = vmul.f32 %v769, %v828
  %v833 = vadd.f32 %v714, %v829
  %v834 = vadd.f32 %v715, %v830
  %v835 = vadd.f32 %v716, %v831
  %v836 = vadd.f32 %v717, %v832
  %v837 = vsub.f32 %v833, %v257
  %v838 = vsub.f32 %v834, %v561
  %v839 = vsub.f32 %v835, %v258
  %v840 = vsub.f32 %v836, %v562
  %841 = vset.pattern.permute.xlu0 4
  %842 = vperm.xlu0 %841, %v31
  %v843 = vpop.permute.xlu0 %842
  %845 = vset.pattern.permute.xlu0 4
  %846 = vperm.xlu0 %845, %v35
  %v847 = vpop.permute.xlu0 %846
  %v849 = vmul.f32 %v843, %v837
  %v850 = vmul.f32 %v843, %v838
  %v851 = vmul.f32 %v847, %v839
  %v852 = vmul.f32 %v847, %v840
  %v857 = vcombine.low %v849, %v850
  %v858 = vcombine.low %v851, %v852
  %v861 = vadd.f32 %v257, %v857
  %v862 = vadd.f32 %v258, %v858
  %vm863 = vcmp.eq.s32.totalorder %v18, 0
  %vm864 = vcmp.eq.s32.totalorder %v19, 0
  %vm865 = vcmp.eq.s32.totalorder %v18, 15
  %vm866 = vcmp.eq.s32.totalorder %v19, 15
  %vm867 = vcmp.eq.s32.totalorder %v20, 0
  %vm868 = vcmp.eq.s32.totalorder %v21, 0
  %vm869 = vcmp.eq.s32.totalorder %v20, 15
  %vm870 = vcmp.eq.s32.totalorder %v21, 15
  %v873 = vcombine.high %v861, %v861
  %v874 = vcombine.high %v862, %v862
  %877 = vrot.lane.b32.xlu0 %v861, 1
  %v878 = vpop.permute.xlu0 %877
  %879 = vrot.lane.b32.xlu0 %v862, 1
  %v880 = vpop.permute.xlu0 %879
  %881 = vrot.lane.b32.xlu0 %v873, 1
  %v882 = vpop.permute.xlu0 %881
  %883 = vrot.lane.b32.xlu0 %v874, 1
  %v884 = vpop.permute.xlu0 %883
  %v885 = vsel %vm672, %v878, %v882
  %v886 = vsel %vm672, %v880, %v884
  %v887 = vsel %vm672, %v882, %v878
  %v888 = vsel %vm672, %v884, %v880
  %889 = vrot.lane.b32.xlu0 %v861, 127
  %v890 = vpop.permute.xlu0 %889
  %891 = vrot.lane.b32.xlu0 %v862, 127
  %v892 = vpop.permute.xlu0 %891
  %893 = vrot.lane.b32.xlu0 %v873, 127
  %v894 = vpop.permute.xlu0 %893
  %895 = vrot.lane.b32.xlu0 %v874, 127
  %v896 = vpop.permute.xlu0 %895
  %v897 = vsel %vm697, %v890, %v894
  %v898 = vsel %vm697, %v892, %v896
  %v899 = vsel %vm697, %v894, %v890
  %v900 = vsel %vm697, %v896, %v892
  %v901 = vsel %vm863, 1, 0
  %v902 = vsel %vm864, 1, 0
  %vm903 = vcmp.eq.s32.totalorder %v901, 1
  %vm904 = vcmp.eq.s32.totalorder %v902, 1
  %v905 = vsel %vm903, %v897, %v887
  %v906 = vsel %vm904, %v899, %v885
  %v907 = vsel %vm903, %v898, %v888
  %v908 = vsel %vm904, %v900, %v886
  %v909 = vsel %vm865, 1, 0
  %v910 = vsel %vm866, 1, 0
  %vm911 = vcmp.eq.s32.totalorder %v909, 1
  %vm912 = vcmp.eq.s32.totalorder %v910, 1
  %v913 = vsel %vm911, %v887, %v897
  %v914 = vsel %vm912, %v885, %v899
  %v915 = vsel %vm911, %v888, %v898
  %v916 = vsel %vm912, %v886, %v900
  %v917 = vadd.f32 %v905, %v913
  %v918 = vadd.f32 %v906, %v914
  %v919 = vadd.f32 %v907, %v915
  %v920 = vadd.f32 %v908, %v916
  %921 = vset.pattern.permute.xlu0 9
  %922 = vperm.xlu0 %921, %v31
  %v923 = vpop.permute.xlu0 %922
  %925 = vset.pattern.permute.xlu0 9
  %926 = vperm.xlu0 %925, %v35
  %v927 = vpop.permute.xlu0 %926
  %v929 = vmul.f32 %v923, %v861
  %v930 = vmul.f32 %v927, %v862
  %931 = vset.pattern.permute.xlu0 8
  %932 = vperm.xlu0 %931, %v31
  %v933 = vpop.permute.xlu0 %932
  %935 = vset.pattern.permute.xlu0 8
  %936 = vperm.xlu0 %935, %v35
  %v937 = vpop.permute.xlu0 %936
  %v939 = vmul.f32 %v933, %v917
  %v940 = vmul.f32 %v933, %v918
  %v941 = vmul.f32 %v937, %v919
  %v942 = vmul.f32 %v937, %v920
  %v947 = vcombine.low %v939, %v940
  %v948 = vcombine.low %v941, %v942
  %v951 = vadd.f32 %v929, %v947
  %v952 = vadd.f32 %v930, %v948
  %v955 = vcombine.high %v951, %v951
  %v956 = vcombine.high %v952, %v952
  %959 = vrot.lane.b32.xlu0 %v951, 16
  %v960 = vpop.permute.xlu0 %959
  %961 = vrot.lane.b32.xlu0 %v952, 16
  %v962 = vpop.permute.xlu0 %961
  %963 = vrot.lane.b32.xlu0 %v955, 16
  %v964 = vpop.permute.xlu0 %963
  %965 = vrot.lane.b32.xlu0 %v956, 16
  %v966 = vpop.permute.xlu0 %965
  %v967 = vsel %vm590, %v960, %v964
  %v968 = vsel %vm590, %v962, %v966
  %v969 = vsel %vm590, %v964, %v960
  %v970 = vsel %vm590, %v966, %v962
  %971 = vrot.lane.b32.xlu0 %v951, 112
  %v972 = vpop.permute.xlu0 %971
  %973 = vrot.lane.b32.xlu0 %v952, 112
  %v974 = vpop.permute.xlu0 %973
  %975 = vrot.lane.b32.xlu0 %v955, 112
  %v976 = vpop.permute.xlu0 %975
  %977 = vrot.lane.b32.xlu0 %v956, 112
  %v978 = vpop.permute.xlu0 %977
  %v979 = vsel %vm795, %v972, %v976
  %v980 = vsel %vm795, %v974, %v978
  %v981 = vsel %vm795, %v976, %v972
  %v982 = vsel %vm795, %v978, %v974
  %v983 = vsel %vm867, 1, 0
  %v984 = vsel %vm868, 1, 0
  %vm985 = vcmp.eq.s32.totalorder %v983, 1
  %vm986 = vcmp.eq.s32.totalorder %v984, 1
  %v987 = vsel %vm985, %v979, %v969
  %v988 = vsel %vm986, %v981, %v967
  %v989 = vsel %vm985, %v980, %v970
  %v990 = vsel %vm986, %v982, %v968
  %v991 = vsel %vm869, 1, 0
  %v992 = vsel %vm870, 1, 0
  %vm993 = vcmp.eq.s32.totalorder %v991, 1
  %vm994 = vcmp.eq.s32.totalorder %v992, 1
  %v995 = vsel %vm993, %v969, %v979
  %v996 = vsel %vm994, %v967, %v981
  %v997 = vsel %vm993, %v970, %v980
  %v998 = vsel %vm994, %v968, %v982
  %v999 = vadd.f32 %v987, %v995
  %v1000 = vadd.f32 %v988, %v996
  %v1001 = vadd.f32 %v989, %v997
  %v1002 = vadd.f32 %v990, %v998
  %v1003 = vmul.f32 %v923, %v951
  %v1004 = vmul.f32 %v927, %v952
  %v1005 = vmul.f32 %v933, %v999
  %v1006 = vmul.f32 %v933, %v1000
  %v1007 = vmul.f32 %v937, %v1001
  %v1008 = vmul.f32 %v937, %v1002
  %v1013 = vcombine.low %v1005, %v1006
  %v1014 = vcombine.low %v1007, %v1008
  %v1017 = vadd.f32 %v1003, %v1013
  %v1018 = vadd.f32 %v1004, %v1014
  %v1019 = vsub.f32 %v1017, %v861
  %v1020 = vsub.f32 %v1018, %v862
  %1021 = vset.pattern.permute.xlu0 7
  %1022 = vperm.xlu0 %1021, %v31
  %v1023 = vpop.permute.xlu0 %1022
  %1025 = vset.pattern.permute.xlu0 7
  %1026 = vperm.xlu0 %1025, %v35
  %v1027 = vpop.permute.xlu0 %1026
  %v1029 = vmul.f32 %v1023, %v1019
  %v1030 = vmul.f32 %v1027, %v1020
  %v1031 = vadd.f32 %v861, %v1029
  %v1032 = vadd.f32 %v862, %v1030
  %1033 = vst [vmem:[%s2] sm:$0x77] %v1031
  %1034 = vst [vmem:[%s2 + $0x8] sm:$0x77] %v1032
  // Predicated region
  $region10: #{tpu_custom_call.1} parent=0 // pred_check
    _
  $region11: #{tpu_custom_call.1} parent=0 // pred_check_branch
    %1036 = sbr.rel (0) target = $region13
  $region12: #{tpu_custom_call.1} parent=0 // pred_region
    _
  $region13: #{tpu_custom_call.1} parent=0 // pred_fallthru
    _
  // Predicated region
  $region14: #{tpu_custom_call.1} parent=0 // pred_check
    _
  $region15: #{tpu_custom_call.1} parent=0 // pred_check_branch
    %1038 = sbr.rel (0) target = $region17
  $region16: #{tpu_custom_call.1} parent=0 // pred_region
    _
  $region17: #{tpu_custom_call.1} parent=0 // pred_fallthru
    _

</llo_original>
